<compile_context>
chip_gen: v5e
topology: v5e:2x2
jax: 0.10.0
libtpu: 0.0.40
codegen_flags: <defaults>
</compile_context>

<pallas_src>
import functools
import string

import jax
import jax.numpy as jnp
from jax.experimental import pallas as pl
from jax.experimental.pallas import tpu as pltpu


def rnn_seq_kernel(idx_ref,                       # SMEM (seq,) int32 letter ids
                   h0_ref,                        # (B, H)
                   w_ih_x_ref, w_ih_h_ref, b_ih_ref,
                   w_io_x_ref, w_io_h_ref, b_io_ref,
                   out_ref,                       # (1, B, O_pad) block at step t
                   h_out_ref,                     # (B, H) final hidden
                   h_scr,                         # VMEM scratch (B, H), carried
                   *, n_out):
    t = pl.program_id(0)

    @pl.when(t == 0)
    def _():
        h_scr[...] = h0_ref[...]

    letter = idx_ref[t]
    h = h_scr[...]                                          # (B, H) f32

    # x is one-hot  ->  x @ W_x is just a gather of one weight row.
    xw_ih = w_ih_x_ref[pl.ds(letter, 1), :]                 # (1, H)
    xw_io = w_io_x_ref[pl.ds(letter, 1), :]                 # (1, O_pad)

    # hidden = i2h(cat(x, h)) ; logits = i2o(cat(x, h))
    new_h = (xw_ih
             + jnp.dot(h, w_ih_h_ref[...], preferred_element_type=jnp.float32)
             + b_ih_ref[...])
    logits = (xw_io
              + jnp.dot(h, w_io_h_ref[...], preferred_element_type=jnp.float32)
              + b_io_ref[...])

    # Mask the padded logit columns so LogSoftmax over the valid columns is
    # exactly the unpadded result (exp(-inf) == 0 contributes nothing).
    col = jax.lax.broadcasted_iota(jnp.int32, logits.shape, 1)
    logits = jnp.where(col < n_out, logits, -jnp.inf)

    m = jnp.max(logits, axis=1, keepdims=True)
    shifted = logits - m
    lse = jnp.log(jnp.sum(jnp.exp(shifted), axis=1, keepdims=True))

    out_ref[...] = (shifted - lse)[None]                    # (1, B, O_pad)
    h_scr[...] = new_h
    h_out_ref[...] = new_h


def prepare_params(w_i2h, b_i2h, w_i2o, b_i2o, input_size, hidden_size,
                   *, in_pad=64, out_pad=128):
    """One-time layout prep (not on the hot path): transpose to
    (in_features, out_features), split the concatenated-input axis into the
    x / h halves, pad x rows 57->64 (sublanes) and output columns 18->128
    (lane-dense stores)."""
    out_size = w_i2o.shape[0]
    wt_ih = w_i2h.T                                    # (in+hid, hid)
    wt_io = w_i2o.T                                    # (in+hid, out)
    w_ih_x = jnp.pad(wt_ih[:input_size], ((0, in_pad - input_size), (0, 0)))
    w_ih_h = wt_ih[input_size:]
    w_io_x = jnp.pad(wt_io[:input_size],
                     ((0, in_pad - input_size), (0, out_pad - out_size)))
    w_io_h = jnp.pad(wt_io[input_size:], ((0, 0), (0, out_pad - out_size)))
    b_ih = b_i2h.reshape(1, hidden_size)
    b_io = jnp.pad(b_i2o, (0, out_pad - out_size)).reshape(1, out_pad)
    return (w_ih_x, w_ih_h, b_ih, w_io_x, w_io_h, b_io)


def rnn_sequence(letter_ids, h0, params, *, n_out):
    """Run the RNN over a whole sequence of letter indices in one pallas_call.

    Returns (per-step log-softmax outputs (seq, B, n_out), final hidden (B, H)).
    """
    w_ih_x, w_ih_h, b_ih, w_io_x, w_io_h, b_io = params
    seq_len = letter_ids.shape[0]
    batch, hidden_size = h0.shape
    out_pad = w_io_h.shape[1]

    const = lambda t, idx: (0, 0)   # h0 / weights / biases: resident across time

    grid_spec = pltpu.PrefetchScalarGridSpec(
        num_scalar_prefetch=1,
        grid=(seq_len,),
        in_specs=[
            pl.BlockSpec((batch, hidden_size), const),   # h0
            pl.BlockSpec(w_ih_x.shape, const),
            pl.BlockSpec(w_ih_h.shape, const),
            pl.BlockSpec(b_ih.shape, const),
            pl.BlockSpec(w_io_x.shape, const),
            pl.BlockSpec(w_io_h.shape, const),
            pl.BlockSpec(b_io.shape, const),
        ],
        out_specs=(
            pl.BlockSpec((1, batch, out_pad), lambda t, idx: (t, 0, 0)),
            pl.BlockSpec((batch, hidden_size), const),
        ),
        scratch_shapes=[pltpu.VMEM((batch, hidden_size), jnp.float32)],
    )

    out_all, h_final = pl.pallas_call(
        functools.partial(rnn_seq_kernel, n_out=n_out),
        out_shape=(jax.ShapeDtypeStruct((seq_len, batch, out_pad), jnp.float32),
                   jax.ShapeDtypeStruct((batch, hidden_size), jnp.float32)),
        grid_spec=grid_spec,
        compiler_params=pltpu.CompilerParams(
            dimension_semantics=("arbitrary",)),  # hidden state carries across t
    )(letter_ids, h0, w_ih_x, w_ih_h, b_ih, w_io_x, w_io_h, b_io)

    return out_all[:, :, :n_out], h_final


if __name__ == "__main__":
    all_letters = string.ascii_letters + " .,;'"
    n_letters = len(all_letters)          # 57
    n_hidden = 128
    n_categories = 18                     # classic name-classification output size
    batch = 1                             # module uses hidden = zeros(1, n_hidden)

    key = jax.random.PRNGKey(0)
    k1, k2, k3, k4 = jax.random.split(key, 4)

    in_feats = n_letters + n_hidden
    bound = in_feats ** -0.5
    # Deterministic PyTorch-style uniform init (shapes match nn.Linear).
    w_i2h = jax.random.uniform(k1, (n_hidden, in_feats), jnp.float32, -bound, bound)
    b_i2h = jax.random.uniform(k2, (n_hidden,), jnp.float32, -bound, bound)
    w_i2o = jax.random.uniform(k3, (n_categories, in_feats), jnp.float32, -bound, bound)
    b_i2o = jax.random.uniform(k4, (n_categories,), jnp.float32, -bound, bound)

    params = prepare_params(w_i2h, b_i2h, w_i2o, b_i2o, n_letters, n_hidden)

    # lineToTensor('Albert') -> we only need the letter indices (one-hot gather).
    name = "Albert"
    letter_ids = jnp.array([all_letters.find(c) for c in name], dtype=jnp.int32)
    h0 = jnp.zeros((batch, n_hidden), jnp.float32)

    out_seq, h_final = rnn_sequence(letter_ids, h0, params, n_out=n_categories)
    out_seq = jax.block_until_ready(out_seq)
    h_final = jax.block_until_ready(h_final)

    # Pure-JAX reference: loop the PyTorch forward step exactly.
    hi = jax.lax.Precision.HIGHEST
    ref_outs = []
    h = h0
    for idx in letter_ids:
        x = jnp.zeros((batch, n_letters), jnp.float32).at[0, idx].set(1.0)
        combined = jnp.concatenate([x, h], axis=1)
        h = jnp.dot(combined, w_i2h.T, precision=hi) + b_i2h
        logits = jnp.dot(combined, w_i2o.T, precision=hi) + b_i2o
        ref_outs.append(jax.nn.log_softmax(logits, axis=1))
    ref_out_seq = jnp.stack(ref_outs, axis=0)

    assert out_seq.shape == (len(name), batch, n_categories)
    assert h_final.shape == (batch, n_hidden)
    assert jnp.allclose(out_seq, ref_out_seq, atol=1e-4, rtol=1e-4), (
        float(jnp.max(jnp.abs(out_seq - ref_out_seq))))
    assert jnp.allclose(h_final, h, atol=1e-4, rtol=1e-4), (
        float(jnp.max(jnp.abs(h_final - h))))
    print("KERNEL_OK")
</pallas_src>

<mosaic_0001>
module attributes {stable_mosaic.version = 11 : i64} {
  func.func @rnn_seq_kernel(%arg0: i32, %arg1: memref<6xi32, #tpu.memory_space<smem>>, %arg2: memref<1x128xf32, #tpu.memory_space<vmem>>, %arg3: memref<64x128xf32, #tpu.memory_space<vmem>>, %arg4: memref<128x128xf32, #tpu.memory_space<vmem>>, %arg5: memref<1x128xf32, #tpu.memory_space<vmem>>, %arg6: memref<64x128xf32, #tpu.memory_space<vmem>>, %arg7: memref<128x128xf32, #tpu.memory_space<vmem>>, %arg8: memref<1x128xf32, #tpu.memory_space<vmem>>, %arg9: memref<1x1x128xf32, #tpu.memory_space<vmem>>, %arg10: memref<1x128xf32, #tpu.memory_space<vmem>>, %arg11: memref<1x128xf32, #tpu.memory_space<vmem>>) attributes {dimension_semantics = [#tpu.dimension_semantics<arbitrary>], iteration_bounds = array<i64: 6>, scalar_prefetch = 1 : i64, scratch_operands = 1 : i64, tpu.core_type = #tpu.core_type<tc>, window_params = [{pipeline_mode = #tpu.pipeline_mode<synchronous>, transform_indices = @transform_0, window_bounds = array<i64: 1, 128>}, {pipeline_mode = #tpu.pipeline_mode<synchronous>, transform_indices = @transform_1, window_bounds = array<i64: 64, 128>}, {pipeline_mode = #tpu.pipeline_mode<synchronous>, transform_indices = @transform_2, window_bounds = array<i64: 128, 128>}, {pipeline_mode = #tpu.pipeline_mode<synchronous>, transform_indices = @transform_3, window_bounds = array<i64: 1, 128>}, {pipeline_mode = #tpu.pipeline_mode<synchronous>, transform_indices = @transform_4, window_bounds = array<i64: 64, 128>}, {pipeline_mode = #tpu.pipeline_mode<synchronous>, transform_indices = @transform_5, window_bounds = array<i64: 128, 128>}, {pipeline_mode = #tpu.pipeline_mode<synchronous>, transform_indices = @transform_6, window_bounds = array<i64: 1, 128>}, {transform_indices = @transform_7, window_bounds = array<i64: 1, 1, 128>}, {pipeline_mode = #tpu.pipeline_mode<synchronous>, transform_indices = @transform_8, window_bounds = array<i64: 1, 128>}]} {
    %c0_i32 = arith.constant 0 : i32
    %0 = arith.cmpi eq, %arg0, %c0_i32 : i32
    %1 = arith.extui %0 : i1 to i32
    %c0_i32_0 = arith.constant 0 : i32
    %2 = arith.cmpi ne, %1, %c0_i32_0 : i32
    scf.if %2 {
      %c0_23 = arith.constant 0 : index
      %c0_24 = arith.constant 0 : index
      %39 = vector.load %arg2[%c0_23, %c0_24] : memref<1x128xf32, #tpu.memory_space<vmem>>, vector<1x128xf32>
      %c0_25 = arith.constant 0 : index
      %c0_26 = arith.constant 0 : index
      %40 = vector.load %arg11[%c0_25, %c0_26] : memref<1x128xf32, #tpu.memory_space<vmem>>, vector<1x128xf32>
      tpu.vector_store %arg11[%c0_25, %c0_26], %39 {strides = array<i32>} : memref<1x128xf32, #tpu.memory_space<vmem>>, vector<1x128xf32>,
    } else {
    }
    %3 = arith.index_cast %arg0 : i32 to index
    %4 = memref.load %arg1[%3] : memref<6xi32, #tpu.memory_space<smem>>
    %c0 = arith.constant 0 : index
    %c0_1 = arith.constant 0 : index
    %5 = vector.load %arg11[%c0, %c0_1] : memref<1x128xf32, #tpu.memory_space<vmem>>, vector<1x128xf32>
    %6 = arith.index_cast %4 : i32 to index
    %c0_2 = arith.constant 0 : index
    %7 = vector.load %arg3[%6, %c0_2] : memref<64x128xf32, #tpu.memory_space<vmem>>, vector<1x128xf32>
    %8 = arith.index_cast %4 : i32 to index
    %c0_3 = arith.constant 0 : index
    %9 = vector.load %arg6[%8, %c0_3] : memref<64x128xf32, #tpu.memory_space<vmem>>, vector<1x128xf32>
    %c0_4 = arith.constant 0 : index
    %c0_5 = arith.constant 0 : index
    %10 = vector.load %arg4[%c0_4, %c0_5] : memref<128x128xf32, #tpu.memory_space<vmem>>, vector<128x128xf32>
    %cst = arith.constant dense<0.000000e+00> : vector<1x128xf32>
    %11 = tpu.matmul %5, %10, %cst {dimension_numbers = #tpu.dot_dimension_numbers<[1], [0], [0], [1], [0, 0, 1, 1], [], []>} : vector<1x128xf32>, vector<128x128xf32>, vector<1x128xf32> -> vector<1x128xf32>
    %12 = arith.addf %7, %11 : vector<1x128xf32>
    %c0_6 = arith.constant 0 : index
    %c0_7 = arith.constant 0 : index
    %13 = vector.load %arg5[%c0_6, %c0_7] : memref<1x128xf32, #tpu.memory_space<vmem>>, vector<1x128xf32>
    %14 = arith.addf %12, %13 : vector<1x128xf32>
    %c0_8 = arith.constant 0 : index
    %c0_9 = arith.constant 0 : index
    %15 = vector.load %arg7[%c0_8, %c0_9] : memref<128x128xf32, #tpu.memory_space<vmem>>, vector<128x128xf32>
    %cst_10 = arith.constant dense<0.000000e+00> : vector<1x128xf32>
    %16 = tpu.matmul %5, %15, %cst_10 {dimension_numbers = #tpu.dot_dimension_numbers<[1], [0], [0], [1], [0, 0, 1, 1], [], []>} : vector<1x128xf32>, vector<128x128xf32>, vector<1x128xf32> -> vector<1x128xf32>
    %17 = arith.addf %9, %16 : vector<1x128xf32>
    %c0_11 = arith.constant 0 : index
    %c0_12 = arith.constant 0 : index
    %18 = vector.load %arg8[%c0_11, %c0_12] : memref<1x128xf32, #tpu.memory_space<vmem>>, vector<1x128xf32>
    %19 = arith.addf %17, %18 : vector<1x128xf32>
    %20 = tpu.iota {dimensions = array<i32: 1>} : vector<1x128xi32>
    %c18_i32 = arith.constant 18 : i32
    %21 = vector.broadcast %c18_i32 : i32 to vector<1x128xi32>
    %22 = arith.cmpi slt, %20, %21 : vector<1x128xi32>
    %cst_13 = arith.constant 0xFF800000 : f32
    %23 = vector.broadcast %cst_13 : f32 to vector<1x128xf32>
    %24 = arith.select %22, %19, %23 : vector<1x128xi1>, vector<1x128xf32>
    %cst_14 = arith.constant dense<0xFF800000> : vector<1xf32>
    %25 = vector.multi_reduction <maximumf>, %24, %cst_14 [1] : vector<1x128xf32> to vector<1xf32>
    %26 = vector.shape_cast %25 : vector<1xf32> to vector<1x1xf32>
    %27 = vector.broadcast %26 : vector<1x1xf32> to vector<1x128xf32>
    %28 = arith.subf %24, %27 : vector<1x128xf32>
    %29 = math.exp %28 : vector<1x128xf32>
    %cst_15 = arith.constant dense<0.000000e+00> : vector<1xf32>
    %30 = vector.multi_reduction <add>, %29, %cst_15 [1] : vector<1x128xf32> to vector<1xf32>
    %31 = vector.shape_cast %30 : vector<1xf32> to vector<1x1xf32>
    %32 = math.log %31 : vector<1x1xf32>
    %33 = vector.broadcast %32 : vector<1x1xf32> to vector<1x128xf32>
    %34 = arith.subf %28, %33 : vector<1x128xf32>
    %35 = vector.shape_cast %34 : vector<1x128xf32> to vector<1x1x128xf32>
    %c0_16 = arith.constant 0 : index
    %c0_17 = arith.constant 0 : index
    %c0_18 = arith.constant 0 : index
    %36 = vector.load %arg9[%c0_16, %c0_17, %c0_18] : memref<1x1x128xf32, #tpu.memory_space<vmem>>, vector<1x1x128xf32>
    tpu.vector_store %arg9[%c0_16, %c0_17, %c0_18], %35 {strides = array<i32>} : memref<1x1x128xf32, #tpu.memory_space<vmem>>, vector<1x1x128xf32>,
    %c0_19 = arith.constant 0 : index
    %c0_20 = arith.constant 0 : index
    %37 = vector.load %arg11[%c0_19, %c0_20] : memref<1x128xf32, #tpu.memory_space<vmem>>, vector<1x128xf32>
    tpu.vector_store %arg11[%c0_19, %c0_20], %14 {strides = array<i32>} : memref<1x128xf32, #tpu.memory_space<vmem>>, vector<1x128xf32>,
    %c0_21 = arith.constant 0 : index
    %c0_22 = arith.constant 0 : index
    %38 = vector.load %arg10[%c0_21, %c0_22] : memref<1x128xf32, #tpu.memory_space<vmem>>, vector<1x128xf32>
    tpu.vector_store %arg10[%c0_21, %c0_22], %14 {strides = array<i32>} : memref<1x128xf32, #tpu.memory_space<vmem>>, vector<1x128xf32>,
    return
  }
  func.func @transform_0(%arg0: i32, %arg1: memref<6xi32, #tpu.memory_space<smem>>) -> (i32, i32) {
    %c0_i32 = arith.constant 0 : i32
    %c0_i32_0 = arith.constant 0 : i32
    %c0_i32_1 = arith.constant 0 : i32
    return %c0_i32, %c0_i32_0 : i32, i32
  }
  func.func @transform_1(%arg0: i32, %arg1: memref<6xi32, #tpu.memory_space<smem>>) -> (i32, i32) {
    %c0_i32 = arith.constant 0 : i32
    %c0_i32_0 = arith.constant 0 : i32
    %c0_i32_1 = arith.constant 0 : i32
    return %c0_i32, %c0_i32_0 : i32, i32
  }
  func.func @transform_2(%arg0: i32, %arg1: memref<6xi32, #tpu.memory_space<smem>>) -> (i32, i32) {
    %c0_i32 = arith.constant 0 : i32
    %c0_i32_0 = arith.constant 0 : i32
    %c0_i32_1 = arith.constant 0 : i32
    return %c0_i32, %c0_i32_0 : i32, i32
  }
  func.func @transform_3(%arg0: i32, %arg1: memref<6xi32, #tpu.memory_space<smem>>) -> (i32, i32) {
    %c0_i32 = arith.constant 0 : i32
    %c0_i32_0 = arith.constant 0 : i32
    %c0_i32_1 = arith.constant 0 : i32
    return %c0_i32, %c0_i32_0 : i32, i32
  }
  func.func @transform_4(%arg0: i32, %arg1: memref<6xi32, #tpu.memory_space<smem>>) -> (i32, i32) {
    %c0_i32 = arith.constant 0 : i32
    %c0_i32_0 = arith.constant 0 : i32
    %c0_i32_1 = arith.constant 0 : i32
    return %c0_i32, %c0_i32_0 : i32, i32
  }
  func.func @transform_5(%arg0: i32, %arg1: memref<6xi32, #tpu.memory_space<smem>>) -> (i32, i32) {
    %c0_i32 = arith.constant 0 : i32
    %c0_i32_0 = arith.constant 0 : i32
    %c0_i32_1 = arith.constant 0 : i32
    return %c0_i32, %c0_i32_0 : i32, i32
  }
  func.func @transform_6(%arg0: i32, %arg1: memref<6xi32, #tpu.memory_space<smem>>) -> (i32, i32) {
    %c0_i32 = arith.constant 0 : i32
    %c0_i32_0 = arith.constant 0 : i32
    %c0_i32_1 = arith.constant 0 : i32
    return %c0_i32, %c0_i32_0 : i32, i32
  }
  func.func @transform_7(%arg0: i32, %arg1: memref<6xi32, #tpu.memory_space<smem>>) -> (i32, i32, i32) {
    %c0_i32 = arith.constant 0 : i32
    %c0_i32_0 = arith.constant 0 : i32
    %c0_i32_1 = arith.constant 0 : i32
    return %arg0, %c0_i32, %c0_i32_0 : i32, i32, i32
  }
  func.func @transform_8(%arg0: i32, %arg1: memref<6xi32, #tpu.memory_space<smem>>) -> (i32, i32) {
    %c0_i32 = arith.constant 0 : i32
    %c0_i32_0 = arith.constant 0 : i32
    %c0_i32_1 = arith.constant 0 : i32
    return %c0_i32, %c0_i32_0 : i32, i32
  }
}

</mosaic_0001>

<llo_original>
// kernel: tpu_custom_call.1
$region0: #{tpu_custom_call.1}
  #allocation0 [shape = 'u32[]', space=smem, size = 0x4, offset = 0x4, fixed_abs, tag = 'smem constant byte address 0x4 - core index']
  #allocation1 [shape = 'u32[72,128]{1,0:T(1,128)}', space=vmem, size = 0x9000, scoped, tag = 'internal scratch']
  #allocation2 [shape = 'f32[1,128]{1,0:T(1,128)}', space=vmem, size = 0x200, scoped, tag = 'scratch operand']
  #allocation3 [shape = 's32[1]{0}', space=sflag, size = 0x4, scoped, tag = 'scoped memory for tpu_custom_call.1']
  #allocation4 [shape = 'u8[512]{0}', space=smem, size = 0x200, scoped, tag = 'prefetched SMEM operand 0']
  %s0 = inlined_call_operand.hbm [shape: s32[6], index: 0, kind: input, shape index: {}]
  %s1 = inlined_call_operand.hbm [shape: f32[1,128], index: 1, kind: input, shape index: {}]
  %s2 = inlined_call_operand.hbm [shape: f32[64,128], index: 2, kind: input, shape index: {}]
  %s3 = inlined_call_operand.hbm [shape: f32[128,128], index: 3, kind: input, shape index: {}]
  %s4 = inlined_call_operand.vmem [shape: f32[1,128], index: 4, kind: input, shape index: {}]
  %s5 = inlined_call_operand.hbm [shape: f32[64,128], index: 5, kind: input, shape index: {}]
  %s6 = inlined_call_operand.hbm [shape: f32[128,128], index: 6, kind: input, shape index: {}]
  %s7 = inlined_call_operand.vmem [shape: f32[1,128], index: 7, kind: input, shape index: {}]
  %s8 = inlined_call_operand.hbm [shape: f32[6,1,128], index: 8, kind: output, shape index: {0}]
  %s9 = inlined_call_operand.hbm [shape: f32[1,128], index: 9, kind: output, shape index: {1}]
  %10 = xla_tuple %s8, %s9
  %s11 = sld [smem:[#allocation0]]
  $region93: #{tpu_custom_call.1} parent=0
    _
  %s13 = ssub.s32 1, %s11
  %s14 = scalar_select 0, %s13, %s11
  %s16 = sshll.u32 %s0, 4
  %s17 = int_to_ptr.hbm [resolvable:$true] %s16
  %19 = dma.hbm_to_smem %s17, 16, [#allocation4], [#allocation3]
  %21 = dma.done [#allocation3], 16
  %22 = sfence
  $region1: #{tpu_custom_call.1} parent=0
    #allocation5 [shape = 'u8[512]{0}', space=vmem, size = 0x400, scoped, tag = 'input window, operand 1, single buffered']
    #allocation6 [shape = 's32[2]{0}', space=sflag, size = 0x8, scoped, tag = 'scoped memory for tpu_custom_call.1']
    #allocation7 [shape = 's32[2]{0}', space=sflag, size = 0x8, scoped, tag = 'scoped memory for tpu_custom_call.1']
    #allocation8 [shape = 'u8[32768]{0}', space=vmem, size = 0x8000, scoped, tag = 'input window, operand 2, single buffered']
    #allocation9 [shape = 's32[1]{0}', space=sflag, size = 0x4, scoped, tag = 'scoped memory for tpu_custom_call.1']
    #allocation10 [shape = 'u8[65536]{0}', space=vmem, size = 0x10000, scoped, tag = 'input window, operand 3, single buffered']
    #allocation11 [shape = 'u8[32768]{0}', space=vmem, size = 0x8000, scoped, tag = 'input window, operand 5, single buffered']
    #allocation12 [shape = 's32[1]{0}', space=sflag, size = 0x4, scoped, tag = 'scoped memory for tpu_custom_call.1']
    #allocation13 [shape = 'u8[65536]{0}', space=vmem, size = 0x10000, scoped, tag = 'input window, operand 6, single buffered']
    #allocation14 [shape = 'u8[1024]{0}', space=vmem, size = 0x400, scoped, tag = 'output window, operand 0']
    #allocation15 [shape = 'u8[512]{0}', space=vmem, size = 0x400, scoped, tag = 'output window, operand 1, single buffered']
    #allocation16 [shape = 's32[1]{0}', space=sflag, size = 0x4, scoped, tag = 'scoped memory for tpu_custom_call.1']
    %23 = vsyncpa [#allocation6], 0
    %24 = vsyncpa [#allocation9], 0
    %25 = vsyncpa [#allocation12], 0
    %26 = vsyncpa [#allocation7], 0
    %s27 = scalar_lea.sflag [#allocation7], 1
    %28 = vsyncpa %s27, 0
    %29 = vsyncpa [#allocation16], 0
    loop: start=0, step=1, limit=8
    $region2: #{tpu_custom_call.1} parent=1 // loop_pre_header
      _
    $region3: #{tpu_custom_call.1} parent=1 // loop_header
      %s31 = sphi 0, %s35
      %p32 = scmp.ge.s32.totalorder %s31, 8
      %s39 = sphi 0, %s39
      %s41 = sphi 0, %s39
      %s42 = sphi 0, %s41
      %s56 = sphi 0, %s42
      %s60 = sphi 0, %s60
      %s62 = sphi 0, %s60
      %s63 = sphi 0, %s62
      %s77 = sphi 0, %s63
      %s81 = sphi 0, %s81
      %s83 = sphi 0, %s81
      %s84 = sphi 0, %s83
      %s98 = sphi 0, %s84
      %s102 = sphi 0, %s102
      %s104 = sphi 0, %s102
      %s105 = sphi 0, %s104
      %s119 = sphi 0, %s105
      %s123 = sphi 0, %s123
      %s125 = sphi 0, %s123
      %s126 = sphi 0, %s125
      %s140 = sphi 0, %s126
      %s144 = sphi 0, %s144
      %s146 = sphi 0, %s144
      %s147 = sphi 0, %s146
      %s161 = sphi 0, %s147
      %s165 = sphi 0, %s165
      %s167 = sphi 0, %s165
      %s168 = sphi 0, %s167
      %s182 = sphi 0, %s168
      %s188 = sphi 0, %s190
      %s191 = sphi 0, %s188
      %s192 = sphi 0, %s191
      %s208 = sphi 0, %s192
      %s212 = sphi 0, %s212
      %s214 = sphi 0, %s212
      %s215 = sphi 0, %s214
      %s229 = sphi 0, %s215
    $region4: #{tpu_custom_call.1} parent=1 // loop_header_branch
      %34 = sbr.rel (%p32) target = $region8
    $region5: #{tpu_custom_call.1} parent=1 // loop_body
      %s36 = ssub.s32 %s31, 1
      %s37 = ssub.s32 %s31, 2
      %s38 = sadd.s32 %s31, 1
      %s40 = sadd.s32 %s39, 1
      %p43 = scmp.eq.s32.totalorder %s31, 5
      %p44 = scmp.ne.s32.totalorder %s39, %s41
      %p45 = scmp.eq.s32.totalorder %s31, 0
      %p46 = por %p44, %p45
      %p47 = scmp.ne.s32.totalorder %s39, %s41
      %p48 = scmp.eq.s32.totalorder %s36, 5
      %p49 = por %p47, %p48
      %p50 = scmp.ne.s32.totalorder %s41, %s42
      %p51 = scmp.eq.s32.totalorder %s36, 0
      %p52 = por %p50, %p51
      %p53 = scmp.ne.s32.totalorder %s41, %s42
      %p54 = scmp.eq.s32.totalorder %s37, 5
      %p55 = por %p53, %p54
      %p57 = scmp.ne.s32.totalorder %s42, %s56
      %p58 = scmp.eq.s32.totalorder %s37, 0
      %p59 = por %p57, %p58
      %s61 = sadd.s32 %s60, 1
      %p64 = scmp.eq.s32.totalorder %s31, 5
      %p65 = scmp.ne.s32.totalorder %s60, %s62
      %p66 = scmp.eq.s32.totalorder %s31, 0
      %p67 = por %p65, %p66
      %p68 = scmp.ne.s32.totalorder %s60, %s62
      %p69 = scmp.eq.s32.totalorder %s36, 5
      %p70 = por %p68, %p69
      %p71 = scmp.ne.s32.totalorder %s62, %s63
      %p72 = scmp.eq.s32.totalorder %s36, 0
      %p73 = por %p71, %p72
      %p74 = scmp.ne.s32.totalorder %s62, %s63
      %p75 = scmp.eq.s32.totalorder %s37, 5
      %p76 = por %p74, %p75
      %p78 = scmp.ne.s32.totalorder %s63, %s77
      %p79 = scmp.eq.s32.totalorder %s37, 0
      %p80 = por %p78, %p79
      %s82 = sadd.s32 %s81, 1
      %p85 = scmp.eq.s32.totalorder %s31, 5
      %p86 = scmp.ne.s32.totalorder %s81, %s83
      %p87 = scmp.eq.s32.totalorder %s31, 0
      %p88 = por %p86, %p87
      %p89 = scmp.ne.s32.totalorder %s81, %s83
      %p90 = scmp.eq.s32.totalorder %s36, 5
      %p91 = por %p89, %p90
      %p92 = scmp.ne.s32.totalorder %s83, %s84
      %p93 = scmp.eq.s32.totalorder %s36, 0
      %p94 = por %p92, %p93
      %p95 = scmp.ne.s32.totalorder %s83, %s84
      %p96 = scmp.eq.s32.totalorder %s37, 5
      %p97 = por %p95, %p96
      %p99 = scmp.ne.s32.totalorder %s84, %s98
      %p100 = scmp.eq.s32.totalorder %s37, 0
      %p101 = por %p99, %p100
      %s103 = sadd.s32 %s102, 1
      %p106 = scmp.eq.s32.totalorder %s31, 5
      %p107 = scmp.ne.s32.totalorder %s102, %s104
      %p108 = scmp.eq.s32.totalorder %s31, 0
      %p109 = por %p107, %p108
      %p110 = scmp.ne.s32.totalorder %s102, %s104
      %p111 = scmp.eq.s32.totalorder %s36, 5
      %p112 = por %p110, %p111
      %p113 = scmp.ne.s32.totalorder %s104, %s105
      %p114 = scmp.eq.s32.totalorder %s36, 0
      %p115 = por %p113, %p114
      %p116 = scmp.ne.s32.totalorder %s104, %s105
      %p117 = scmp.eq.s32.totalorder %s37, 5
      %p118 = por %p116, %p117
      %p120 = scmp.ne.s32.totalorder %s105, %s119
      %p121 = scmp.eq.s32.totalorder %s37, 0
      %p122 = por %p120, %p121
      %s124 = sadd.s32 %s123, 1
      %p127 = scmp.eq.s32.totalorder %s31, 5
      %p128 = scmp.ne.s32.totalorder %s123, %s125
      %p129 = scmp.eq.s32.totalorder %s31, 0
      %p130 = por %p128, %p129
      %p131 = scmp.ne.s32.totalorder %s123, %s125
      %p132 = scmp.eq.s32.totalorder %s36, 5
      %p133 = por %p131, %p132
      %p134 = scmp.ne.s32.totalorder %s125, %s126
      %p135 = scmp.eq.s32.totalorder %s36, 0
      %p136 = por %p134, %p135
      %p137 = scmp.ne.s32.totalorder %s125, %s126
      %p138 = scmp.eq.s32.totalorder %s37, 5
      %p139 = por %p137, %p138
      %p141 = scmp.ne.s32.totalorder %s126, %s140
      %p142 = scmp.eq.s32.totalorder %s37, 0
      %p143 = por %p141, %p142
      %s145 = sadd.s32 %s144, 1
      %p148 = scmp.eq.s32.totalorder %s31, 5
      %p149 = scmp.ne.s32.totalorder %s144, %s146
      %p150 = scmp.eq.s32.totalorder %s31, 0
      %p151 = por %p149, %p150
      %p152 = scmp.ne.s32.totalorder %s144, %s146
      %p153 = scmp.eq.s32.totalorder %s36, 5
      %p154 = por %p152, %p153
      %p155 = scmp.ne.s32.totalorder %s146, %s147
      %p156 = scmp.eq.s32.totalorder %s36, 0
      %p157 = por %p155, %p156
      %p158 = scmp.ne.s32.totalorder %s146, %s147
      %p159 = scmp.eq.s32.totalorder %s37, 5
      %p160 = por %p158, %p159
      %p162 = scmp.ne.s32.totalorder %s147, %s161
      %p163 = scmp.eq.s32.totalorder %s37, 0
      %p164 = por %p162, %p163
      %s166 = sadd.s32 %s165, 1
      %p169 = scmp.eq.s32.totalorder %s31, 5
      %p170 = scmp.ne.s32.totalorder %s165, %s167
      %p171 = scmp.eq.s32.totalorder %s31, 0
      %p172 = por %p170, %p171
      %p173 = scmp.ne.s32.totalorder %s165, %s167
      %p174 = scmp.eq.s32.totalorder %s36, 5
      %p175 = por %p173, %p174
      %p176 = scmp.ne.s32.totalorder %s167, %s168
      %p177 = scmp.eq.s32.totalorder %s36, 0
      %p178 = por %p176, %p177
      %p179 = scmp.ne.s32.totalorder %s167, %s168
      %p180 = scmp.eq.s32.totalorder %s37, 5
      %p181 = por %p179, %p180
      %p183 = scmp.ne.s32.totalorder %s168, %s182
      %p184 = scmp.eq.s32.totalorder %s37, 0
      %p185 = por %p183, %p184
      %s186 = ssub.s32 %s31, %s38
      %p187 = scmp.eq.s32.totalorder %s186, 0
      %s189 = sadd.s32 %s188, 1
      %s190 = scalar_select %p187, %s188, %s189
      %p193 = pneg %p187
      %p194 = scmp.eq.s32.totalorder %s31, 5
      %p195 = por %p193, %p194
      %p196 = scmp.ne.s32.totalorder %s188, %s191
      %p197 = scmp.eq.s32.totalorder %s31, 0
      %p198 = por %p196, %p197
      %p199 = scmp.ne.s32.totalorder %s188, %s191
      %p200 = scmp.eq.s32.totalorder %s36, 5
      %p201 = por %p199, %p200
      %p202 = scmp.ne.s32.totalorder %s191, %s192
      %p203 = scmp.eq.s32.totalorder %s36, 0
      %p204 = por %p202, %p203
      %p205 = scmp.ne.s32.totalorder %s191, %s192
      %p206 = scmp.eq.s32.totalorder %s37, 5
      %p207 = por %p205, %p206
      %p209 = scmp.ne.s32.totalorder %s192, %s208
      %p210 = scmp.eq.s32.totalorder %s37, 0
      %p211 = por %p209, %p210
      %s213 = sadd.s32 %s212, 1
      %p216 = scmp.eq.s32.totalorder %s31, 5
      %p217 = scmp.ne.s32.totalorder %s212, %s214
      %p218 = scmp.eq.s32.totalorder %s31, 0
      %p219 = por %p217, %p218
      %p220 = scmp.ne.s32.totalorder %s212, %s214
      %p221 = scmp.eq.s32.totalorder %s36, 5
      %p222 = por %p220, %p221
      %p223 = scmp.ne.s32.totalorder %s214, %s215
      %p224 = scmp.eq.s32.totalorder %s36, 0
      %p225 = por %p223, %p224
      %p226 = scmp.ne.s32.totalorder %s214, %s215
      %p227 = scmp.eq.s32.totalorder %s37, 5
      %p228 = por %p226, %p227
      %p230 = scmp.ne.s32.totalorder %s215, %s229
      %p231 = scmp.eq.s32.totalorder %s37, 0
      %p232 = por %p230, %p231
      %p233 = scmp.le.s32.totalorder 1, %s31
      %p234 = scmp.lt.s32.totalorder %s31, 7
      %p235 = pnand %p233, %p234
      %p236 = pneg %p235
      // Predicated region
      $region9: #{tpu_custom_call.1} parent=5 // pred_check
        _
      $region10: #{tpu_custom_call.1} parent=5 // pred_check_branch
        %238 = sbr.rel (%p235) target = $region12
      $region11: #{tpu_custom_call.1} parent=5 // pred_region
        %s239 = ssub.s32 %s31, 1
        // Predicated region
        $region13: #{tpu_custom_call.1} parent=11 // pred_check
          %p240 = pneg %p52
        $region14: #{tpu_custom_call.1} parent=11 // pred_check_branch
          %242 = sbr.rel (%p240) target = $region16
        $region15: #{tpu_custom_call.1} parent=11 // pred_region
          %244 = vsyncadd [#allocation6], 0
          %s246 = sshll.u32 %s1, 4
          %s247 = int_to_ptr.hbm [resolvable:$true] %s246
          %s248 = sshll.u32 [#allocation5], 4
          %s249 = int_to_ptr.vmem [resolvable:$true] %s248
          %251 = dma.hbm_to_vmem [thread:$0]  %s247, 16, %s249, [#allocation6]
        $region16: #{tpu_custom_call.1} parent=11 // pred_fallthru
          _
        // Predicated region
        $region17: #{tpu_custom_call.1} parent=11 // pred_check
          %p252 = pneg %p73
        $region18: #{tpu_custom_call.1} parent=11 // pred_check_branch
          %254 = sbr.rel (%p252) target = $region20
        $region19: #{tpu_custom_call.1} parent=11 // pred_region
          %256 = vsyncadd [#allocation9], 0
          %s257 = sshll.u32 %s2, 4
          %s258 = int_to_ptr.hbm [resolvable:$true] %s257
          %s259 = sshll.u32 [#allocation8], 4
          %s260 = int_to_ptr.vmem [resolvable:$true] %s259
          %265 = dma.hbm_to_vmem [thread:$0]  %s258, 1024, %s260, [#allocation9], 128, 128, 8
        $region20: #{tpu_custom_call.1} parent=11 // pred_fallthru
          _
        // Predicated region
        $region21: #{tpu_custom_call.1} parent=11 // pred_check
          %p266 = pneg %p94
        $region22: #{tpu_custom_call.1} parent=11 // pred_check_branch
          %268 = sbr.rel (%p266) target = $region24
        $region23: #{tpu_custom_call.1} parent=11 // pred_region
          %270 = vsyncadd [#allocation9], 0
          %s271 = sshll.u32 %s3, 4
          %s272 = int_to_ptr.hbm [resolvable:$true] %s271
          %s273 = sshll.u32 [#allocation10], 4
          %s274 = int_to_ptr.vmem [resolvable:$true] %s273
          %279 = dma.hbm_to_vmem [thread:$0]  %s272, 2048, %s274, [#allocation9], 128, 128, 8
        $region24: #{tpu_custom_call.1} parent=11 // pred_fallthru
          _
        // Predicated region
        $region25: #{tpu_custom_call.1} parent=11 // pred_check
          %p280 = pneg %p115
        $region26: #{tpu_custom_call.1} parent=11 // pred_check_branch
          %282 = sbr.rel (%p280) target = $region28
        $region27: #{tpu_custom_call.1} parent=11 // pred_region
          _
        $region28: #{tpu_custom_call.1} parent=11 // pred_fallthru
          _
        // Predicated region
        $region29: #{tpu_custom_call.1} parent=11 // pred_check
          %p283 = pneg %p136
        $region30: #{tpu_custom_call.1} parent=11 // pred_check_branch
          %285 = sbr.rel (%p283) target = $region32
        $region31: #{tpu_custom_call.1} parent=11 // pred_region
          %287 = vsyncadd [#allocation12], 0
          %s288 = sshll.u32 %s5, 4
          %s289 = int_to_ptr.hbm [resolvable:$true] %s288
          %s290 = sshll.u32 [#allocation11], 4
          %s291 = int_to_ptr.vmem [resolvable:$true] %s290
          %296 = dma.hbm_to_vmem [thread:$0]  %s289, 1024, %s291, [#allocation12], 128, 128, 8
        $region32: #{tpu_custom_call.1} parent=11 // pred_fallthru
          _
        // Predicated region
        $region33: #{tpu_custom_call.1} parent=11 // pred_check
          %p297 = pneg %p157
        $region34: #{tpu_custom_call.1} parent=11 // pred_check_branch
          %299 = sbr.rel (%p297) target = $region36
        $region35: #{tpu_custom_call.1} parent=11 // pred_region
          %301 = vsyncadd [#allocation12], 0
          %s302 = sshll.u32 %s6, 4
          %s303 = int_to_ptr.hbm [resolvable:$true] %s302
          %s304 = sshll.u32 [#allocation13], 4
          %s305 = int_to_ptr.vmem [resolvable:$true] %s304
          %310 = dma.hbm_to_vmem [thread:$0]  %s303, 2048, %s305, [#allocation12], 128, 128, 8
        $region36: #{tpu_custom_call.1} parent=11 // pred_fallthru
          _
        // Predicated region
        $region37: #{tpu_custom_call.1} parent=11 // pred_check
          %p311 = pneg %p178
        $region38: #{tpu_custom_call.1} parent=11 // pred_check_branch
          %313 = sbr.rel (%p311) target = $region40
        $region39: #{tpu_custom_call.1} parent=11 // pred_region
          _
        $region40: #{tpu_custom_call.1} parent=11 // pred_fallthru
          _
      $region12: #{tpu_custom_call.1} parent=5 // pred_fallthru
        _
      %p314 = scmp.lt.s32.totalorder %s31, 6
      // Predicated region
      $region41: #{tpu_custom_call.1} parent=5 // pred_check
        %p315 = pneg %p314
      $region42: #{tpu_custom_call.1} parent=5 // pred_check_branch
        %317 = sbr.rel (%p315) target = $region44
      $region43: #{tpu_custom_call.1} parent=5 // pred_region
        _
      $region44: #{tpu_custom_call.1} parent=5 // pred_fallthru
        _
      %p318 = scmp.le.s32.totalorder 1, %s31
      %p319 = scmp.lt.s32.totalorder %s31, 7
      %p320 = pnand %p318, %p319
      %p321 = pneg %p320
      // Predicated region
      $region45: #{tpu_custom_call.1} parent=5 // pred_check
        _
      $region46: #{tpu_custom_call.1} parent=5 // pred_check_branch
        %323 = sbr.rel (%p320) target = $region48
      $region47: #{tpu_custom_call.1} parent=5 // pred_region
        %s324 = ssub.s32 %s31, 1
        // Predicated region
        $region49: #{tpu_custom_call.1} parent=47 // pred_check
          %p325 = pneg %p52
        $region50: #{tpu_custom_call.1} parent=47 // pred_check_branch
          %327 = sbr.rel (%p325) target = $region52
        $region51: #{tpu_custom_call.1} parent=47 // pred_region
          %329 = dma.done [#allocation6], 16
        $region52: #{tpu_custom_call.1} parent=47 // pred_fallthru
          _
        // Predicated region
        $region53: #{tpu_custom_call.1} parent=47 // pred_check
          %p330 = pneg %p73
        $region54: #{tpu_custom_call.1} parent=47 // pred_check_branch
          %332 = sbr.rel (%p330) target = $region56
        $region55: #{tpu_custom_call.1} parent=47 // pred_region
          %334 = dma.done [#allocation9], 1024
        $region56: #{tpu_custom_call.1} parent=47 // pred_fallthru
          _
        // Predicated region
        $region57: #{tpu_custom_call.1} parent=47 // pred_check
          %p335 = pneg %p94
        $region58: #{tpu_custom_call.1} parent=47 // pred_check_branch
          %337 = sbr.rel (%p335) target = $region60
        $region59: #{tpu_custom_call.1} parent=47 // pred_region
          %339 = dma.done [#allocation9], 2048
        $region60: #{tpu_custom_call.1} parent=47 // pred_fallthru
          _
        // Predicated region
        $region61: #{tpu_custom_call.1} parent=47 // pred_check
          %p340 = pneg %p136
        $region62: #{tpu_custom_call.1} parent=47 // pred_check_branch
          %342 = sbr.rel (%p340) target = $region64
        $region63: #{tpu_custom_call.1} parent=47 // pred_region
          %344 = dma.done [#allocation12], 1024
        $region64: #{tpu_custom_call.1} parent=47 // pred_fallthru
          _
        // Predicated region
        $region65: #{tpu_custom_call.1} parent=47 // pred_check
          %p345 = pneg %p157
        $region66: #{tpu_custom_call.1} parent=47 // pred_check_branch
          %347 = sbr.rel (%p345) target = $region68
        $region67: #{tpu_custom_call.1} parent=47 // pred_region
          %349 = dma.done [#allocation12], 2048
        $region68: #{tpu_custom_call.1} parent=47 // pred_fallthru
          _
        %p350 = pneg %p52
        %p351 = pneg %p49
        %p352 = pneg %p73
        %p353 = pneg %p70
        %p354 = pneg %p94
        %p355 = pneg %p91
        %p356 = pneg %p115
        %p357 = pneg %p112
        %p358 = pneg %p136
        %p359 = pneg %p133
        %p360 = pneg %p157
        %p361 = pneg %p154
        %p362 = pneg %p178
        %p363 = pneg %p175
        %p364 = pneg %p204
        %p365 = pneg %p201
        %s366 = sand.u32 %s191, 1
        %s367 = scalar_lea.sflag [#allocation7], %s366
        %s368 = sand.u32 %s191, 1
        %s369 = scalar_lea.vmem [#allocation14], %s368
        %p370 = pneg %p225
        %p371 = pneg %p222
        %p372 = scmp.eq.s32.totalorder %s36, 0
        // Predicated region
        $region69: #{tpu_custom_call.1} parent=47 // pred_check
          %p373 = pneg %p372
        $region70: #{tpu_custom_call.1} parent=47 // pred_check_branch
          %375 = sbr.rel (%p373) target = $region72
        $region71: #{tpu_custom_call.1} parent=47 // pred_region
          %v376 = vld [vmem:[#allocation5] sm:$0x1]
          %377 = vst [vmem:[#allocation2] sm:$0x1] %v376
        $region72: #{tpu_custom_call.1} parent=47 // pred_fallthru
          _
        %s378 = sld [smem:[#allocation4 + %s36]]
        %v379 = vld [vmem:[#allocation2] sm:$0x1]
        %s380 = scalar_lea.vmem [#allocation8], %s378
        %v381 = vld [vmem:[%s380] sm:$0x1]
        %s382 = scalar_lea.vmem [#allocation11], %s378
        %v383 = vld [vmem:[%s382] sm:$0x1]
        %v384 = vld [vmem:[#allocation10] sm:$0xff]
        %v385 = vld [vmem:[#allocation10 + $0x8] sm:$0xff]
        %v386 = vld [vmem:[#allocation10 + $0x10] sm:$0xff]
        %v387 = vld [vmem:[#allocation10 + $0x18] sm:$0xff]
        %v388 = vld [vmem:[#allocation10 + $0x20] sm:$0xff]
        %v389 = vld [vmem:[#allocation10 + $0x28] sm:$0xff]
        %v390 = vld [vmem:[#allocation10 + $0x30] sm:$0xff]
        %v391 = vld [vmem:[#allocation10 + $0x38] sm:$0xff]
        %v392 = vld [vmem:[#allocation10 + $0x40] sm:$0xff]
        %v393 = vld [vmem:[#allocation10 + $0x48] sm:$0xff]
        %v394 = vld [vmem:[#allocation10 + $0x50] sm:$0xff]
        %v395 = vld [vmem:[#allocation10 + $0x58] sm:$0xff]
        %v396 = vld [vmem:[#allocation10 + $0x60] sm:$0xff]
        %v397 = vld [vmem:[#allocation10 + $0x68] sm:$0xff]
        %v398 = vld [vmem:[#allocation10 + $0x70] sm:$0xff]
        %v399 = vld [vmem:[#allocation10 + $0x78] sm:$0xff]
        %400 = vmatpush.msra.mxu0 %v399
        %401 = vmatpush.msra.mxu0 %v398
        %402 = vmatpush.msra.mxu0 %v397
        %403 = vmatpush.msra.mxu0 %v396
        %404 = vmatpush.msra.mxu0 %v395
        %405 = vmatpush.msra.mxu0 %v394
        %406 = vmatpush.msra.mxu0 %v393
        %407 = vmatpush.msra.mxu0 %v392
        %408 = vmatpush.msra.mxu0 %v391
        %409 = vmatpush.msra.mxu0 %v390
        %410 = vmatpush.msra.mxu0 %v389
        %411 = vmatpush.msra.mxu0 %v388
        %412 = vmatpush.msra.mxu0 %v387
        %413 = vmatpush.msra.mxu0 %v386
        %414 = vmatpush.msra.mxu0 %v385
        %415 = vmatpush.msra.mxu0 %v384
        %416 = vmatmul.f32.gmra.mxu0 %v379
        %v417 = vpop.f32.mrf.mxu0
        %v418 = vadd.f32 0.0, %v417
        %419 = vdwg.mxu0
        %v420 = vadd.f32 %v381, %v418
        %v421 = vld [vmem:[%s4] sm:$0x1]
        %v422 = vadd.f32 %v420, %v421
        %v423 = vld [vmem:[#allocation13] sm:$0xff]
        %v424 = vld [vmem:[#allocation13 + $0x8] sm:$0xff]
        %v425 = vld [vmem:[#allocation13 + $0x10] sm:$0xff]
        %v426 = vld [vmem:[#allocation13 + $0x18] sm:$0xff]
        %v427 = vld [vmem:[#allocation13 + $0x20] sm:$0xff]
        %v428 = vld [vmem:[#allocation13 + $0x28] sm:$0xff]
        %v429 = vld [vmem:[#allocation13 + $0x30] sm:$0xff]
        %v430 = vld [vmem:[#allocation13 + $0x38] sm:$0xff]
        %v431 = vld [vmem:[#allocation13 + $0x40] sm:$0xff]
        %v432 = vld [vmem:[#allocation13 + $0x48] sm:$0xff]
        %v433 = vld [vmem:[#allocation13 + $0x50] sm:$0xff]
        %v434 = vld [vmem:[#allocation13 + $0x58] sm:$0xff]
        %v435 = vld [vmem:[#allocation13 + $0x60] sm:$0xff]
        %v436 = vld [vmem:[#allocation13 + $0x68] sm:$0xff]
        %v437 = vld [vmem:[#allocation13 + $0x70] sm:$0xff]
        %v438 = vld [vmem:[#allocation13 + $0x78] sm:$0xff]
        %439 = vmatpush.msra.mxu0 %v438
        %440 = vmatpush.msra.mxu0 %v437
        %441 = vmatpush.msra.mxu0 %v436
        %442 = vmatpush.msra.mxu0 %v435
        %443 = vmatpush.msra.mxu0 %v434
        %444 = vmatpush.msra.mxu0 %v433
        %445 = vmatpush.msra.mxu0 %v432
        %446 = vmatpush.msra.mxu0 %v431
        %447 = vmatpush.msra.mxu0 %v430
        %448 = vmatpush.msra.mxu0 %v429
        %449 = vmatpush.msra.mxu0 %v428
        %450 = vmatpush.msra.mxu0 %v427
        %451 = vmatpush.msra.mxu0 %v426
        %452 = vmatpush.msra.mxu0 %v425
        %453 = vmatpush.msra.mxu0 %v424
        %454 = vmatpush.msra.mxu0 %v423
        %455 = vmatmul.f32.gmra.mxu0 %v379
        %v456 = vpop.f32.mrf.mxu0
        %v457 = vadd.f32 0.0, %v456
        %458 = vdwg.mxu0
        %v459 = vadd.f32 %v383, %v457
        %v460 = vld [vmem:[%s7] sm:$0x1]
        %v461 = vadd.f32 %v459, %v460
        %v462 = vlaneseq
        %v463 = vand.u32 %v462, 127
        %vm464 = vcmp.lt.s32.totalorder %v463, 18
        %v465 = vsel %vm464, %v461, -inf
        %vm466 = vcmask 1040384
        %v467 = vsel %vm466, %v465, -inf
        %468 = vmax.xlane.f32.xlu0 %v467
        %v469 = vpop.xlane.xlu0 %468
        %v470 = vsub.f32 %v465, %v469
        %v471 = vmul.f32 %v470, 1.442695
        %v472 = vpow.pop %v471
        %v473 = vsel %vm466, %v472, 0.0
        %474 = vadd.xlane.f32.xlu0 %v473
        %v475 = vpop.xlane.xlu0 %474
        %v476 = vlog2.pop %v475
        %v477 = vmul.f32 %v476, 0.6931472
        %v478 = vsub.f32 %v470, %v477
        %479 = vst [vmem:[%s369] sm:$0x1] %v478
        %480 = vst [vmem:[#allocation2] sm:$0x1] %v422
        %481 = vst [vmem:[#allocation15] sm:$0x1] %v422
        %s482 = sand.u32 %s191, 1
        %s483 = scalar_lea.sflag [#allocation7], %s482
        %s484 = sand.u32 %s191, 1
        %s485 = scalar_lea.vmem [#allocation14], %s484
        // Predicated region
        $region73: #{tpu_custom_call.1} parent=47 // pred_check
          %p486 = pneg %p201
        $region74: #{tpu_custom_call.1} parent=47 // pred_check_branch
          %488 = sbr.rel (%p486) target = $region76
        $region75: #{tpu_custom_call.1} parent=47 // pred_region
          %490 = vsyncadd %s483, 0
          %s491 = scalar_lea.hbm %s8, %s36
          %s493 = sshll.u32 %s485, 4
          %s494 = int_to_ptr.vmem [resolvable:$true] %s493
          %s495 = sshll.u32 %s491, 4
          %s496 = int_to_ptr.hbm [resolvable:$true] %s495
          %498 = dma.vmem_to_hbm [thread:$0]  %s494, 16, %s496, %s483
        $region76: #{tpu_custom_call.1} parent=47 // pred_fallthru
          _
        // Predicated region
        $region77: #{tpu_custom_call.1} parent=47 // pred_check
          %p499 = pneg %p222
        $region78: #{tpu_custom_call.1} parent=47 // pred_check_branch
          %501 = sbr.rel (%p499) target = $region80
        $region79: #{tpu_custom_call.1} parent=47 // pred_region
          %503 = vsyncadd [#allocation16], 0
          %s505 = sshll.u32 [#allocation15], 4
          %s506 = int_to_ptr.vmem [resolvable:$true] %s505
          %s507 = sshll.u32 %s9, 4
          %s508 = int_to_ptr.hbm [resolvable:$true] %s507
          %510 = dma.vmem_to_hbm [thread:$0]  %s506, 16, %s508, [#allocation16]
        $region80: #{tpu_custom_call.1} parent=47 // pred_fallthru
          _
        // Predicated region
        $region81: #{tpu_custom_call.1} parent=47 // pred_check
          %p511 = pneg %p222
        $region82: #{tpu_custom_call.1} parent=47 // pred_check_branch
          %513 = sbr.rel (%p511) target = $region84
        $region83: #{tpu_custom_call.1} parent=47 // pred_region
          %515 = dma.done [#allocation16], 16
        $region84: #{tpu_custom_call.1} parent=47 // pred_fallthru
          _
      $region48: #{tpu_custom_call.1} parent=5 // pred_fallthru
        _
      %p516 = scmp.le.s32.totalorder 2, %s31
      // Predicated region
      $region85: #{tpu_custom_call.1} parent=5 // pred_check
        %p517 = pneg %p516
      $region86: #{tpu_custom_call.1} parent=5 // pred_check_branch
        %519 = sbr.rel (%p517) target = $region88
      $region87: #{tpu_custom_call.1} parent=5 // pred_region
        %s520 = ssub.s32 %s31, 2
        // Predicated region
        $region89: #{tpu_custom_call.1} parent=87 // pred_check
          %p521 = pneg %p207
        $region90: #{tpu_custom_call.1} parent=87 // pred_check_branch
          %523 = sbr.rel (%p521) target = $region92
        $region91: #{tpu_custom_call.1} parent=87 // pred_region
          %s524 = sand.u32 %s192, 1
          %s525 = scalar_lea.sflag [#allocation7], %s524
          %s526 = sand.u32 %s192, 1
          %s527 = scalar_lea.vmem [#allocation14], %s526
          %529 = dma.done %s525, 16
        $region92: #{tpu_custom_call.1} parent=87 // pred_fallthru
          _
      $region88: #{tpu_custom_call.1} parent=5 // pred_fallthru
        _
    $region6: #{tpu_custom_call.1} parent=1 // loop_footer
      %s35 = sadd.s32 1, %s31
    $region7: #{tpu_custom_call.1} parent=1 // loop_footer_branch
      %30 = sbr.rel target = $region3
    $region8: #{tpu_custom_call.1} parent=1 // loop_exit
      _
    %530 = vsyncpa [#allocation6], 1
    %s531 = scalar_lea.sflag [#allocation6], 1
    %532 = vsyncpa %s531, 1
    %533 = vsyncpa [#allocation9], 1
    %534 = vsyncpa [#allocation12], 1
    %535 = vsyncpa [#allocation7], 1
    %s536 = scalar_lea.sflag [#allocation7], 1
    %537 = vsyncpa %s536, 1
    %538 = vsyncpa [#allocation16], 1

</llo_original>
